<compile_context>
chip_gen: v7x
topology: tpu7x:2x2x1
jax: 0.10.0
libtpu: 0.0.40
codegen_flags: <defaults>
</compile_context>

<pallas_src>
import functools

import jax
import jax.numpy as jnp
from jax import lax
from jax.experimental import pallas as pl
from jax.experimental.pallas import tpu as pltpu


def _round_up(x, m):
    return ((x + m - 1) // m) * m


def _pick_tile(dim, align, cap):
    """Largest tile (multiple of `align`, <= cap) minimizing the padded extent."""
    dpad = _round_up(dim, align)
    if dpad <= cap:
        return dpad
    best_t, best_pad = align, _round_up(dpad, align)
    t = align
    while t <= cap:
        padded = _round_up(dpad, t)
        if padded < best_pad or (padded == best_pad and t > best_t):
            best_t, best_pad = t, padded
        t += align
    return best_t


# ---------------------------------------------------------------------------
# Kernels
# ---------------------------------------------------------------------------
def _fused_small_kernel(x_ref, w_ref, b_ref, o_ref, *, shared_x, ensemble_size):
    """Whole ensemble in one grid step (all operands fully VMEM resident).

    x_ref: (1 or E, Mp, Kp), w_ref: (E, Kp, Np), b_ref: (E, 1, Np),
    o_ref: (E, Mp, Np).
    """

    def body(e, carry):
        x = x_ref[0] if shared_x else x_ref[e]
        acc = jnp.dot(x, w_ref[e], preferred_element_type=jnp.float32)
        o_ref[e] = (acc + b_ref[e].astype(jnp.float32)).astype(o_ref.dtype)
        return carry

    lax.fori_loop(0, ensemble_size, body, 0, unroll=True)


def _tiled_kernel(x_ref, w_ref, b_ref, o_ref, acc_ref):
    """One (tm, tn) output tile of one ensemble member, reduced over K tiles.

    x_ref: (1, tm, tk), w_ref: (1, tk, tn), b_ref: (1, 1, tn),
    o_ref: (1, tm, tn), acc_ref: (tm, tn) f32 scratch.  K is grid axis 3.
    """
    k = pl.program_id(3)

    @pl.when(k == 0)
    def _():
        acc_ref[...] = jnp.zeros_like(acc_ref)

    acc_ref[...] += jnp.dot(x_ref[0], w_ref[0],
                            preferred_element_type=jnp.float32)

    @pl.when(k == pl.num_programs(3) - 1)
    def _():
        # Bias handled only once, off the K-reduction path.
        o_ref[0] = (acc_ref[...] + b_ref[0].astype(jnp.float32)).astype(o_ref.dtype)


# ---------------------------------------------------------------------------
# Wrapper
# ---------------------------------------------------------------------------
@functools.partial(jax.jit,
                   static_argnames=("tm", "tn", "tk", "small_vmem_bytes"))
def ensemble_linear(x, weight, bias, *, tm=256, tn=256, tk=512,
                    small_vmem_bytes=4 * 1024 * 1024):
    """Forward pass of EnsembleLinear.

    x: (N, in) or (E, N, in); weight: (E, in, out); bias: (E, 1, out).
    Returns (E, N, out).  tm/tn/tk are tile-size caps.
    """
    E, K, N = weight.shape
    assert bias.shape == (E, 1, N)
    assert tm >= 8 and tn >= 128 and tk >= 128

    shared_x = (x.ndim == 2)
    if shared_x:
        x = x[None]                      # (1, M, K): no E-way broadcast in HBM
    else:
        assert x.shape[0] == E
    assert x.shape[2] == K
    M = x.shape[1]

    out_dtype = jnp.result_type(x.dtype, weight.dtype)
    out_itemsize = jnp.dtype(out_dtype).itemsize
    flops = 2 * E * M * K * N

    # Minimal 8/128-aligned sizes (used by the small path and the footprint).
    Mp_s, Kp_s, Np_s = _round_up(M, 8), _round_up(K, 128), _round_up(N, 128)
    footprint = 4 * ((1 if shared_x else E) * Mp_s * Kp_s
                     + E * Kp_s * Np_s + E * Np_s + E * Mp_s * Np_s)

    if footprint <= small_vmem_bytes:
        # Tiny problem: one grid step, E matmuls unrolled (no per-step grid
        # overhead; LLO can overlap the small matmuls).
        xp = jnp.pad(x, ((0, 0), (0, Mp_s - M), (0, Kp_s - K)))
        wp = jnp.pad(weight, ((0, 0), (0, Kp_s - K), (0, Np_s - N)))
        bp = jnp.pad(bias, ((0, 0), (0, 0), (0, Np_s - N)))
        cost = pl.CostEstimate(
            flops=flops, transcendentals=0,
            bytes_accessed=(xp.size * xp.dtype.itemsize
                            + wp.size * wp.dtype.itemsize
                            + bp.size * bp.dtype.itemsize
                            + E * Mp_s * Np_s * out_itemsize))
        out_p = pl.pallas_call(
            functools.partial(_fused_small_kernel, shared_x=shared_x,
                              ensemble_size=E),
            out_shape=jax.ShapeDtypeStruct((E, Mp_s, Np_s), out_dtype),
            cost_estimate=cost,
        )(xp, wp, bp)
        return out_p[:, :M, :N]

    # ----------------------- tiled path -----------------------------------
    # Pick tiles that divide the rounded dims where possible (no padded
    # columns DMA'd / multiplied); always 8/128-aligned so output stores are
    # full 128-lane.
    tm = _pick_tile(M, 8, tm)
    tn = _pick_tile(N, 128, tn)
    tk = _pick_tile(K, 128, tk)
    Mp, Np, Kp = _round_up(M, tm), _round_up(N, tn), _round_up(K, tk)

    xp = jnp.pad(x, ((0, 0), (0, Mp - M), (0, Kp - K)))
    wp = jnp.pad(weight, ((0, 0), (0, Kp - K), (0, Np - N)))
    bp = jnp.pad(bias, ((0, 0), (0, 0), (0, Np - N)))

    cost = pl.CostEstimate(
        flops=flops, transcendentals=0,
        bytes_accessed=(xp.size * xp.dtype.itemsize
                        + wp.size * wp.dtype.itemsize
                        + bp.size * bp.dtype.itemsize
                        + E * Mp * Np * out_itemsize))

    if shared_x:
        # Grid (M, N, E, K): x block index (0, m, k) is constant over the
        # inner (n, e, k) sweep -> x tile stays VMEM-resident across the whole
        # ensemble when K fits in one tile (no re-DMA).
        grid = (Mp // tm, Np // tn, E, Kp // tk)
        x_index = lambda m, n, e, k: (0, m, k)
        w_index = lambda m, n, e, k: (e, k, n)
        b_index = lambda m, n, e, k: (e, 0, n)
        o_index = lambda m, n, e, k: (e, m, n)
    else:
        # Per-member x: grid (E, M, N, K); x tile resident across the N axis.
        grid = (E, Mp // tm, Np // tn, Kp // tk)
        x_index = lambda e, m, n, k: (e, m, k)
        w_index = lambda e, m, n, k: (e, k, n)
        b_index = lambda e, m, n, k: (e, 0, n)
        o_index = lambda e, m, n, k: (e, m, n)

    out_p = pl.pallas_call(
        _tiled_kernel,
        out_shape=jax.ShapeDtypeStruct((E, Mp, Np), out_dtype),
        grid_spec=pltpu.PrefetchScalarGridSpec(
            num_scalar_prefetch=0,
            grid=grid,
            in_specs=[
                pl.BlockSpec((1, tm, tk), x_index),
                pl.BlockSpec((1, tk, tn), w_index),
                pl.BlockSpec((1, 1, tn), b_index),
            ],
            out_specs=pl.BlockSpec((1, tm, tn), o_index),
            scratch_shapes=[pltpu.VMEM((tm, tn), jnp.float32)],
        ),
        compiler_params=pltpu.CompilerParams(
            dimension_semantics=("parallel", "parallel", "parallel",
                                 "arbitrary"),
        ),
        cost_estimate=cost,
    )(xp, wp, bp)

    return out_p[:, :M, :N]


def init_ensemble_linear_params(key, in_features, out_features, ensemble_size=7,
                                dtype=jnp.float32):
    """Deterministic init matching EnsembleLinear.__init__:
    weight ~ trunc_normal(std=1/(2*sqrt(in_features))), bias = 0."""
    std = 1.0 / (2.0 * (in_features ** 0.5))
    w = jax.random.truncated_normal(
        key, -2.0, 2.0, shape=(ensemble_size, in_features, out_features)
    ).astype(dtype) * jnp.asarray(std, dtype)
    b = jnp.zeros((ensemble_size, 1, out_features), dtype=dtype)
    return w, b


# TODO(synk): set_select / update_save are pure parameter bookkeeping; emulate
# by passing already-selected weight/bias slices to ensemble_linear.

if __name__ == "__main__":
    key = jax.random.PRNGKey(0)
    k_w1, k_w2, k_x2, k_x3, k_xb2, k_xb3 = jax.random.split(key, 6)

    # --- Small problem (single-step fused path). ---------------------------
    E, K, N, M = 7, 32, 32, 8
    w_s, b_s = init_ensemble_linear_params(k_w1, K, N, E)

    # 2-D input (N, in) -> broadcast across ensemble (not materialized).
    x2 = jax.random.normal(k_x2, (M, K), dtype=jnp.float32)
    out2 = jax.block_until_ready(ensemble_linear(x2, w_s, b_s))
    ref2 = jnp.einsum("ij,bjk->bik", x2, w_s) + b_s
    assert out2.shape == (E, M, N)
    assert jnp.allclose(out2, ref2, atol=1e-5, rtol=1e-5)

    # 3-D input (E, N, in) -> per-member matmul.
    x3 = jax.random.normal(k_x3, (E, M, K), dtype=jnp.float32)
    out3 = jax.block_until_ready(ensemble_linear(x3, w_s, b_s))
    ref3 = jnp.einsum("bij,bjk->bik", x3, w_s) + b_s
    assert out3.shape == (E, M, N)
    assert jnp.allclose(out3, ref3, atol=1e-5, rtol=1e-5)

    # --- Larger problem (tiled path; N not a multiple of the tile cap). ----
    Eb, Kb, Nb, Mb = 7, 512, 384, 256
    w_b, b_b = init_ensemble_linear_params(k_w2, Kb, Nb, Eb)

    xb2 = jax.random.normal(k_xb2, (Mb, Kb), dtype=jnp.float32)
    outb2 = jax.block_until_ready(ensemble_linear(xb2, w_b, b_b))
    refb2 = jnp.einsum("ij,bjk->bik", xb2, w_b) + b_b
    assert outb2.shape == (Eb, Mb, Nb)
    assert jnp.allclose(outb2, refb2, atol=5e-3, rtol=5e-3)

    xb3 = jax.random.normal(k_xb3, (Eb, Mb, Kb), dtype=jnp.float32)
    outb3 = jax.block_until_ready(ensemble_linear(xb3, w_b, b_b))
    refb3 = jnp.einsum("bij,bjk->bik", xb3, w_b) + b_b
    assert outb3.shape == (Eb, Mb, Nb)
    assert jnp.allclose(outb3, refb3, atol=5e-3, rtol=5e-3)

    print("KERNEL_OK")
</pallas_src>

<mosaic_0001>
module attributes {stable_mosaic.version = 11 : i64} {
  func.func @_fused_small_kernel(%arg0: memref<1x8x128xf32, #tpu.memory_space<vmem>>, %arg1: memref<7x128x128xf32, #tpu.memory_space<vmem>>, %arg2: memref<7x1x128xf32, #tpu.memory_space<vmem>>, %arg3: memref<7x8x128xf32, #tpu.memory_space<vmem>>) attributes {dimension_semantics = [], scalar_prefetch = 0 : i64, scratch_operands = 0 : i64, tpu.core_type = #tpu.core_type<tc>} {
    %c0_i32 = arith.constant 0 : i32
    %c0 = arith.constant 0 : index
    %c0_0 = arith.constant 0 : index
    %c0_1 = arith.constant 0 : index
    %0 = vector.load %arg0[%c0, %c0_0, %c0_1] : memref<1x8x128xf32, #tpu.memory_space<vmem>>, vector<1x8x128xf32>
    %1 = vector.shape_cast %0 : vector<1x8x128xf32> to vector<8x128xf32>
    %2 = arith.index_cast %c0_i32 : i32 to index
    %c0_2 = arith.constant 0 : index
    %c0_3 = arith.constant 0 : index
    %3 = vector.load %arg1[%2, %c0_2, %c0_3] : memref<7x128x128xf32, #tpu.memory_space<vmem>>, vector<1x128x128xf32>
    %4 = vector.shape_cast %3 : vector<1x128x128xf32> to vector<128x128xf32>
    %cst = arith.constant dense<0.000000e+00> : vector<8x128xf32>
    %5 = tpu.matmul %1, %4, %cst {dimension_numbers = #tpu.dot_dimension_numbers<[1], [0], [0], [1], [0, 0, 1, 1], [], []>} : vector<8x128xf32>, vector<128x128xf32>, vector<8x128xf32> -> vector<8x128xf32>
    %6 = arith.index_cast %c0_i32 : i32 to index
    %c0_4 = arith.constant 0 : index
    %c0_5 = arith.constant 0 : index
    %7 = vector.load %arg2[%6, %c0_4, %c0_5] : memref<7x1x128xf32, #tpu.memory_space<vmem>>, vector<1x1x128xf32>
    %8 = vector.shape_cast %7 : vector<1x1x128xf32> to vector<1x128xf32>
    %9 = vector.broadcast %8 : vector<1x128xf32> to vector<8x128xf32>
    %10 = arith.addf %5, %9 : vector<8x128xf32>
    %11 = arith.index_cast %c0_i32 : i32 to index
    %c0_6 = arith.constant 0 : index
    %c0_7 = arith.constant 0 : index
    %12 = vector.load %arg3[%11, %c0_6, %c0_7] : memref<7x8x128xf32, #tpu.memory_space<vmem>>, vector<1x8x128xf32>
    %13 = vector.shape_cast %12 : vector<1x8x128xf32> to vector<8x128xf32>
    %14 = vector.shape_cast %10 : vector<8x128xf32> to vector<1x8x128xf32>
    tpu.vector_store %arg3[%11, %c0_6, %c0_7], %14 {strides = array<i32>} : memref<7x8x128xf32, #tpu.memory_space<vmem>>, vector<1x8x128xf32>,
    %c1_i32 = arith.constant 1 : i32
    %c0_8 = arith.constant 0 : index
    %c0_9 = arith.constant 0 : index
    %c0_10 = arith.constant 0 : index
    %15 = vector.load %arg0[%c0_8, %c0_9, %c0_10] : memref<1x8x128xf32, #tpu.memory_space<vmem>>, vector<1x8x128xf32>
    %16 = vector.shape_cast %15 : vector<1x8x128xf32> to vector<8x128xf32>
    %17 = arith.index_cast %c1_i32 : i32 to index
    %c0_11 = arith.constant 0 : index
    %c0_12 = arith.constant 0 : index
    %18 = vector.load %arg1[%17, %c0_11, %c0_12] : memref<7x128x128xf32, #tpu.memory_space<vmem>>, vector<1x128x128xf32>
    %19 = vector.shape_cast %18 : vector<1x128x128xf32> to vector<128x128xf32>
    %cst_13 = arith.constant dense<0.000000e+00> : vector<8x128xf32>
    %20 = tpu.matmul %16, %19, %cst_13 {dimension_numbers = #tpu.dot_dimension_numbers<[1], [0], [0], [1], [0, 0, 1, 1], [], []>} : vector<8x128xf32>, vector<128x128xf32>, vector<8x128xf32> -> vector<8x128xf32>
    %21 = arith.index_cast %c1_i32 : i32 to index
    %c0_14 = arith.constant 0 : index
    %c0_15 = arith.constant 0 : index
    %22 = vector.load %arg2[%21, %c0_14, %c0_15] : memref<7x1x128xf32, #tpu.memory_space<vmem>>, vector<1x1x128xf32>
    %23 = vector.shape_cast %22 : vector<1x1x128xf32> to vector<1x128xf32>
    %24 = vector.broadcast %23 : vector<1x128xf32> to vector<8x128xf32>
    %25 = arith.addf %20, %24 : vector<8x128xf32>
    %26 = arith.index_cast %c1_i32 : i32 to index
    %c0_16 = arith.constant 0 : index
    %c0_17 = arith.constant 0 : index
    %27 = vector.load %arg3[%26, %c0_16, %c0_17] : memref<7x8x128xf32, #tpu.memory_space<vmem>>, vector<1x8x128xf32>
    %28 = vector.shape_cast %27 : vector<1x8x128xf32> to vector<8x128xf32>
    %29 = vector.shape_cast %25 : vector<8x128xf32> to vector<1x8x128xf32>
    tpu.vector_store %arg3[%26, %c0_16, %c0_17], %29 {strides = array<i32>} : memref<7x8x128xf32, #tpu.memory_space<vmem>>, vector<1x8x128xf32>,
    %c2_i32 = arith.constant 2 : i32
    %c0_18 = arith.constant 0 : index
    %c0_19 = arith.constant 0 : index
    %c0_20 = arith.constant 0 : index
    %30 = vector.load %arg0[%c0_18, %c0_19, %c0_20] : memref<1x8x128xf32, #tpu.memory_space<vmem>>, vector<1x8x128xf32>
    %31 = vector.shape_cast %30 : vector<1x8x128xf32> to vector<8x128xf32>
    %32 = arith.index_cast %c2_i32 : i32 to index
    %c0_21 = arith.constant 0 : index
    %c0_22 = arith.constant 0 : index
    %33 = vector.load %arg1[%32, %c0_21, %c0_22] : memref<7x128x128xf32, #tpu.memory_space<vmem>>, vector<1x128x128xf32>
    %34 = vector.shape_cast %33 : vector<1x128x128xf32> to vector<128x128xf32>
    %cst_23 = arith.constant dense<0.000000e+00> : vector<8x128xf32>
    %35 = tpu.matmul %31, %34, %cst_23 {dimension_numbers = #tpu.dot_dimension_numbers<[1], [0], [0], [1], [0, 0, 1, 1], [], []>} : vector<8x128xf32>, vector<128x128xf32>, vector<8x128xf32> -> vector<8x128xf32>
    %36 = arith.index_cast %c2_i32 : i32 to index
    %c0_24 = arith.constant 0 : index
    %c0_25 = arith.constant 0 : index
    %37 = vector.load %arg2[%36, %c0_24, %c0_25] : memref<7x1x128xf32, #tpu.memory_space<vmem>>, vector<1x1x128xf32>
    %38 = vector.shape_cast %37 : vector<1x1x128xf32> to vector<1x128xf32>
    %39 = vector.broadcast %38 : vector<1x128xf32> to vector<8x128xf32>
    %40 = arith.addf %35, %39 : vector<8x128xf32>
    %41 = arith.index_cast %c2_i32 : i32 to index
    %c0_26 = arith.constant 0 : index
    %c0_27 = arith.constant 0 : index
    %42 = vector.load %arg3[%41, %c0_26, %c0_27] : memref<7x8x128xf32, #tpu.memory_space<vmem>>, vector<1x8x128xf32>
    %43 = vector.shape_cast %42 : vector<1x8x128xf32> to vector<8x128xf32>
    %44 = vector.shape_cast %40 : vector<8x128xf32> to vector<1x8x128xf32>
    tpu.vector_store %arg3[%41, %c0_26, %c0_27], %44 {strides = array<i32>} : memref<7x8x128xf32, #tpu.memory_space<vmem>>, vector<1x8x128xf32>,
    %c3_i32 = arith.constant 3 : i32
    %c0_28 = arith.constant 0 : index
    %c0_29 = arith.constant 0 : index
    %c0_30 = arith.constant 0 : index
    %45 = vector.load %arg0[%c0_28, %c0_29, %c0_30] : memref<1x8x128xf32, #tpu.memory_space<vmem>>, vector<1x8x128xf32>
    %46 = vector.shape_cast %45 : vector<1x8x128xf32> to vector<8x128xf32>
    %47 = arith.index_cast %c3_i32 : i32 to index
    %c0_31 = arith.constant 0 : index
    %c0_32 = arith.constant 0 : index
    %48 = vector.load %arg1[%47, %c0_31, %c0_32] : memref<7x128x128xf32, #tpu.memory_space<vmem>>, vector<1x128x128xf32>
    %49 = vector.shape_cast %48 : vector<1x128x128xf32> to vector<128x128xf32>
    %cst_33 = arith.constant dense<0.000000e+00> : vector<8x128xf32>
    %50 = tpu.matmul %46, %49, %cst_33 {dimension_numbers = #tpu.dot_dimension_numbers<[1], [0], [0], [1], [0, 0, 1, 1], [], []>} : vector<8x128xf32>, vector<128x128xf32>, vector<8x128xf32> -> vector<8x128xf32>
    %51 = arith.index_cast %c3_i32 : i32 to index
    %c0_34 = arith.constant 0 : index
    %c0_35 = arith.constant 0 : index
    %52 = vector.load %arg2[%51, %c0_34, %c0_35] : memref<7x1x128xf32, #tpu.memory_space<vmem>>, vector<1x1x128xf32>
    %53 = vector.shape_cast %52 : vector<1x1x128xf32> to vector<1x128xf32>
    %54 = vector.broadcast %53 : vector<1x128xf32> to vector<8x128xf32>
    %55 = arith.addf %50, %54 : vector<8x128xf32>
    %56 = arith.index_cast %c3_i32 : i32 to index
    %c0_36 = arith.constant 0 : index
    %c0_37 = arith.constant 0 : index
    %57 = vector.load %arg3[%56, %c0_36, %c0_37] : memref<7x8x128xf32, #tpu.memory_space<vmem>>, vector<1x8x128xf32>
    %58 = vector.shape_cast %57 : vector<1x8x128xf32> to vector<8x128xf32>
    %59 = vector.shape_cast %55 : vector<8x128xf32> to vector<1x8x128xf32>
    tpu.vector_store %arg3[%56, %c0_36, %c0_37], %59 {strides = array<i32>} : memref<7x8x128xf32, #tpu.memory_space<vmem>>, vector<1x8x128xf32>,
    %c4_i32 = arith.constant 4 : i32
    %c0_38 = arith.constant 0 : index
    %c0_39 = arith.constant 0 : index
    %c0_40 = arith.constant 0 : index
    %60 = vector.load %arg0[%c0_38, %c0_39, %c0_40] : memref<1x8x128xf32, #tpu.memory_space<vmem>>, vector<1x8x128xf32>
    %61 = vector.shape_cast %60 : vector<1x8x128xf32> to vector<8x128xf32>
    %62 = arith.index_cast %c4_i32 : i32 to index
    %c0_41 = arith.constant 0 : index
    %c0_42 = arith.constant 0 : index
    %63 = vector.load %arg1[%62, %c0_41, %c0_42] : memref<7x128x128xf32, #tpu.memory_space<vmem>>, vector<1x128x128xf32>
    %64 = vector.shape_cast %63 : vector<1x128x128xf32> to vector<128x128xf32>
    %cst_43 = arith.constant dense<0.000000e+00> : vector<8x128xf32>
    %65 = tpu.matmul %61, %64, %cst_43 {dimension_numbers = #tpu.dot_dimension_numbers<[1], [0], [0], [1], [0, 0, 1, 1], [], []>} : vector<8x128xf32>, vector<128x128xf32>, vector<8x128xf32> -> vector<8x128xf32>
    %66 = arith.index_cast %c4_i32 : i32 to index
    %c0_44 = arith.constant 0 : index
    %c0_45 = arith.constant 0 : index
    %67 = vector.load %arg2[%66, %c0_44, %c0_45] : memref<7x1x128xf32, #tpu.memory_space<vmem>>, vector<1x1x128xf32>
    %68 = vector.shape_cast %67 : vector<1x1x128xf32> to vector<1x128xf32>
    %69 = vector.broadcast %68 : vector<1x128xf32> to vector<8x128xf32>
    %70 = arith.addf %65, %69 : vector<8x128xf32>
    %71 = arith.index_cast %c4_i32 : i32 to index
    %c0_46 = arith.constant 0 : index
    %c0_47 = arith.constant 0 : index
    %72 = vector.load %arg3[%71, %c0_46, %c0_47] : memref<7x8x128xf32, #tpu.memory_space<vmem>>, vector<1x8x128xf32>
    %73 = vector.shape_cast %72 : vector<1x8x128xf32> to vector<8x128xf32>
    %74 = vector.shape_cast %70 : vector<8x128xf32> to vector<1x8x128xf32>
    tpu.vector_store %arg3[%71, %c0_46, %c0_47], %74 {strides = array<i32>} : memref<7x8x128xf32, #tpu.memory_space<vmem>>, vector<1x8x128xf32>,
    %c5_i32 = arith.constant 5 : i32
    %c0_48 = arith.constant 0 : index
    %c0_49 = arith.constant 0 : index
    %c0_50 = arith.constant 0 : index
    %75 = vector.load %arg0[%c0_48, %c0_49, %c0_50] : memref<1x8x128xf32, #tpu.memory_space<vmem>>, vector<1x8x128xf32>
    %76 = vector.shape_cast %75 : vector<1x8x128xf32> to vector<8x128xf32>
    %77 = arith.index_cast %c5_i32 : i32 to index
    %c0_51 = arith.constant 0 : index
    %c0_52 = arith.constant 0 : index
    %78 = vector.load %arg1[%77, %c0_51, %c0_52] : memref<7x128x128xf32, #tpu.memory_space<vmem>>, vector<1x128x128xf32>
    %79 = vector.shape_cast %78 : vector<1x128x128xf32> to vector<128x128xf32>
    %cst_53 = arith.constant dense<0.000000e+00> : vector<8x128xf32>
    %80 = tpu.matmul %76, %79, %cst_53 {dimension_numbers = #tpu.dot_dimension_numbers<[1], [0], [0], [1], [0, 0, 1, 1], [], []>} : vector<8x128xf32>, vector<128x128xf32>, vector<8x128xf32> -> vector<8x128xf32>
    %81 = arith.index_cast %c5_i32 : i32 to index
    %c0_54 = arith.constant 0 : index
    %c0_55 = arith.constant 0 : index
    %82 = vector.load %arg2[%81, %c0_54, %c0_55] : memref<7x1x128xf32, #tpu.memory_space<vmem>>, vector<1x1x128xf32>
    %83 = vector.shape_cast %82 : vector<1x1x128xf32> to vector<1x128xf32>
    %84 = vector.broadcast %83 : vector<1x128xf32> to vector<8x128xf32>
    %85 = arith.addf %80, %84 : vector<8x128xf32>
    %86 = arith.index_cast %c5_i32 : i32 to index
    %c0_56 = arith.constant 0 : index
    %c0_57 = arith.constant 0 : index
    %87 = vector.load %arg3[%86, %c0_56, %c0_57] : memref<7x8x128xf32, #tpu.memory_space<vmem>>, vector<1x8x128xf32>
    %88 = vector.shape_cast %87 : vector<1x8x128xf32> to vector<8x128xf32>
    %89 = vector.shape_cast %85 : vector<8x128xf32> to vector<1x8x128xf32>
    tpu.vector_store %arg3[%86, %c0_56, %c0_57], %89 {strides = array<i32>} : memref<7x8x128xf32, #tpu.memory_space<vmem>>, vector<1x8x128xf32>,
    %c6_i32 = arith.constant 6 : i32
    %c0_58 = arith.constant 0 : index
    %c0_59 = arith.constant 0 : index
    %c0_60 = arith.constant 0 : index
    %90 = vector.load %arg0[%c0_58, %c0_59, %c0_60] : memref<1x8x128xf32, #tpu.memory_space<vmem>>, vector<1x8x128xf32>
    %91 = vector.shape_cast %90 : vector<1x8x128xf32> to vector<8x128xf32>
    %92 = arith.index_cast %c6_i32 : i32 to index
    %c0_61 = arith.constant 0 : index
    %c0_62 = arith.constant 0 : index
    %93 = vector.load %arg1[%92, %c0_61, %c0_62] : memref<7x128x128xf32, #tpu.memory_space<vmem>>, vector<1x128x128xf32>
    %94 = vector.shape_cast %93 : vector<1x128x128xf32> to vector<128x128xf32>
    %cst_63 = arith.constant dense<0.000000e+00> : vector<8x128xf32>
    %95 = tpu.matmul %91, %94, %cst_63 {dimension_numbers = #tpu.dot_dimension_numbers<[1], [0], [0], [1], [0, 0, 1, 1], [], []>} : vector<8x128xf32>, vector<128x128xf32>, vector<8x128xf32> -> vector<8x128xf32>
    %96 = arith.index_cast %c6_i32 : i32 to index
    %c0_64 = arith.constant 0 : index
    %c0_65 = arith.constant 0 : index
    %97 = vector.load %arg2[%96, %c0_64, %c0_65] : memref<7x1x128xf32, #tpu.memory_space<vmem>>, vector<1x1x128xf32>
    %98 = vector.shape_cast %97 : vector<1x1x128xf32> to vector<1x128xf32>
    %99 = vector.broadcast %98 : vector<1x128xf32> to vector<8x128xf32>
    %100 = arith.addf %95, %99 : vector<8x128xf32>
    %101 = arith.index_cast %c6_i32 : i32 to index
    %c0_66 = arith.constant 0 : index
    %c0_67 = arith.constant 0 : index
    %102 = vector.load %arg3[%101, %c0_66, %c0_67] : memref<7x8x128xf32, #tpu.memory_space<vmem>>, vector<1x8x128xf32>
    %103 = vector.shape_cast %102 : vector<1x8x128xf32> to vector<8x128xf32>
    %104 = vector.shape_cast %100 : vector<8x128xf32> to vector<1x8x128xf32>
    tpu.vector_store %arg3[%101, %c0_66, %c0_67], %104 {strides = array<i32>} : memref<7x8x128xf32, #tpu.memory_space<vmem>>, vector<1x8x128xf32>,
    %c7_i32 = arith.constant 7 : i32
    return
  }
}

</mosaic_0001>

<llo_original>
// kernel: ensemble_linear.1
$region0: #{ensemble_linear.1}
  #allocation0 [shape = 'u32[]', space=smem, size = 0x4, offset = 0x4, fixed_abs, tag = 'smem constant byte address 0x4 - core index']
  #allocation1 [shape = 'u32[144,128]{1,0:T(1,128)}', space=vmem, size = 0x12000, scoped, tag = 'internal scratch']
  %s0 = inlined_call_operand.vmem [shape: f32[1,8,128], index: 0, kind: input, shape index: {}]
  %s1 = inlined_call_operand.vmem [shape: f32[7,128,128], index: 1, kind: input, shape index: {}]
  %s2 = inlined_call_operand.vmem [shape: f32[7,1,128], index: 2, kind: input, shape index: {}]
  %s3 = inlined_call_operand.hbm [shape: f32[7,8,128], index: 3, kind: output, shape index: {}]
  %s4 = sld [smem:[#allocation0]]
  $region22: #{ensemble_linear.1} parent=0
    _
  %s6 = ssub.s32 1, %s4
  %s7 = scalar_select 0, %s6, %s4
  $region1: #{ensemble_linear.1} parent=0
    #allocation2 [shape = 'u8[28672]{0}', space=vmem, size = 0x7000, scoped, tag = 'output window, operand 0, single buffered']
    #allocation3 [shape = 's32[1]{0}', space=sflag, size = 0x4, scoped, tag = 'scoped memory for ensemble_linear.1']
    %8 = vsyncpa [#allocation3], 0
    // Predicated region
    $region2: #{ensemble_linear.1} parent=1 // pred_check
      _
    $region3: #{ensemble_linear.1} parent=1 // pred_check_branch
      %10 = sbr.rel (0) target = $region5
    $region4: #{ensemble_linear.1} parent=1 // pred_region
      _
    $region5: #{ensemble_linear.1} parent=1 // pred_fallthru
      _
    // Predicated region
    $region6: #{ensemble_linear.1} parent=1 // pred_check
      _
    $region7: #{ensemble_linear.1} parent=1 // pred_check_branch
      %12 = sbr.rel (0) target = $region9
    $region8: #{ensemble_linear.1} parent=1 // pred_region
      _
    $region9: #{ensemble_linear.1} parent=1 // pred_fallthru
      _
    // Predicated region
    $region10: #{ensemble_linear.1} parent=1 // pred_check
      _
    $region11: #{ensemble_linear.1} parent=1 // pred_check_branch
      %14 = sbr.rel (0) target = $region13
    $region12: #{ensemble_linear.1} parent=1 // pred_region
      _
    $region13: #{ensemble_linear.1} parent=1 // pred_fallthru
      _
    %v15 = vld [vmem:[%s0] sm:$0xff]
    %v16 = vld [vmem:[%s1] sm:$0xff]
    %v17 = vld [vmem:[%s1 + $0x8] sm:$0xff]
    %v18 = vld [vmem:[%s1 + $0x10] sm:$0xff]
    %v19 = vld [vmem:[%s1 + $0x18] sm:$0xff]
    %v20 = vld [vmem:[%s1 + $0x20] sm:$0xff]
    %v21 = vld [vmem:[%s1 + $0x28] sm:$0xff]
    %v22 = vld [vmem:[%s1 + $0x30] sm:$0xff]
    %v23 = vld [vmem:[%s1 + $0x38] sm:$0xff]
    %v24 = vld [vmem:[%s1 + $0x40] sm:$0xff]
    %v25 = vld [vmem:[%s1 + $0x48] sm:$0xff]
    %v26 = vld [vmem:[%s1 + $0x50] sm:$0xff]
    %v27 = vld [vmem:[%s1 + $0x58] sm:$0xff]
    %v28 = vld [vmem:[%s1 + $0x60] sm:$0xff]
    %v29 = vld [vmem:[%s1 + $0x68] sm:$0xff]
    %v30 = vld [vmem:[%s1 + $0x70] sm:$0xff]
    %v31 = vld [vmem:[%s1 + $0x78] sm:$0xff]
    %v32 = vld [vmem:[%s2] sm:$0x1]
    %v34 = vlaneseq
    %v35 = vshrl.u32 %v34, 7
    %v36 = vsub.s32 0, %v35
    %v37 = vrot.slane %v32, %v36
    %39 = vmatprep.subr.mxu0 0.0
    %40 = vmatpush1.msra.mxu0 %v16
    %41 = vmatprep.subr.mxu0 0.0
    %42 = vmatpush1.msra.mxu0 %v17
    %43 = vmatprep.subr.mxu0 0.0
    %44 = vmatpush1.msra.mxu0 %v18
    %45 = vmatprep.subr.mxu0 0.0
    %46 = vmatpush1.msra.mxu0 %v19
    %47 = vmatprep.subr.mxu0 0.0
    %48 = vmatpush1.msra.mxu0 %v20
    %49 = vmatprep.subr.mxu0 0.0
    %50 = vmatpush1.msra.mxu0 %v21
    %51 = vmatprep.subr.mxu0 0.0
    %52 = vmatpush1.msra.mxu0 %v22
    %53 = vmatprep.subr.mxu0 0.0
    %54 = vmatpush1.msra.mxu0 %v23
    %55 = vmatprep.subr.mxu0 0.0
    %56 = vmatpush1.msra.mxu0 %v24
    %57 = vmatprep.subr.mxu0 0.0
    %58 = vmatpush1.msra.mxu0 %v25
    %59 = vmatprep.subr.mxu0 0.0
    %60 = vmatpush1.msra.mxu0 %v26
    %61 = vmatprep.subr.mxu0 0.0
    %62 = vmatpush1.msra.mxu0 %v27
    %63 = vmatprep.subr.mxu0 0.0
    %64 = vmatpush1.msra.mxu0 %v28
    %65 = vmatprep.subr.mxu0 0.0
    %66 = vmatpush1.msra.mxu0 %v29
    %67 = vmatprep.subr.mxu0 0.0
    %68 = vmatpush1.msra.mxu0 %v30
    %69 = vmatprep.subr.mxu0 0.0
    %70 = vmatpush1.msra.mxu0 %v31
    %71 = vmatprep.subr.mxu0 0.0
    %72 = vmatpush1.msra.mxu0 0.0
    %73 = vmatprep.subr.mxu0 0.0
    %74 = vmatpush1.msra.mxu0 0.0
    %75 = vmatprep.subr.mxu0 0.0
    %76 = vmatpush1.msra.mxu0 0.0
    %77 = vmatprep.subr.mxu0 0.0
    %78 = vmatpush1.msra.mxu0 0.0
    %79 = vmatprep.subr.mxu0 0.0
    %80 = vmatpush1.msra.mxu0 0.0
    %81 = vmatprep.subr.mxu0 0.0
    %82 = vmatpush1.msra.mxu0 0.0
    %83 = vmatprep.subr.mxu0 0.0
    %84 = vmatpush1.msra.mxu0 0.0
    %85 = vmatprep.subr.mxu0 0.0
    %86 = vmatpush1.msra.mxu0 0.0
    %87 = vmatprep.subr.mxu0 0.0
    %88 = vmatpush1.msra.mxu0 0.0
    %89 = vmatprep.subr.mxu0 0.0
    %90 = vmatpush1.msra.mxu0 0.0
    %91 = vmatprep.subr.mxu0 0.0
    %92 = vmatpush1.msra.mxu0 0.0
    %93 = vmatprep.subr.mxu0 0.0
    %94 = vmatpush1.msra.mxu0 0.0
    %95 = vmatprep.subr.mxu0 0.0
    %96 = vmatpush1.msra.mxu0 0.0
    %97 = vmatprep.subr.mxu0 0.0
    %98 = vmatpush1.msra.mxu0 0.0
    %99 = vmatprep.subr.mxu0 0.0
    %100 = vmatpush1.msra.mxu0 0.0
    %101 = vmatprep.subr.mxu0 0.0
    %102 = vmatpush1.msra.mxu0 0.0
    %103 = vmatprep.mubr.f32.mxu0 0.0
    %104 = vmatmul.mubr.f32.gmra.mrb[0].mxu0 %v15
    %v105 = vpop.f32.mrb[0].mxu0
    %v106 = vadd.f32 %v37, %v105
    %v107 = vpop.f32.mrb[0].mxu0
    %108 = vdwg.mxu0
    %109 = vst [vmem:[#allocation2] sm:$0xff] %v106
    %v110 = vld [vmem:[%s0] sm:$0xff]
    %s111 = scalar_lea.vmem %s1, 128
    %v112 = vld [vmem:[%s111] sm:$0xff]
    %v113 = vld [vmem:[%s111 + $0x8] sm:$0xff]
    %v114 = vld [vmem:[%s111 + $0x10] sm:$0xff]
    %v115 = vld [vmem:[%s111 + $0x18] sm:$0xff]
    %v116 = vld [vmem:[%s111 + $0x20] sm:$0xff]
    %v117 = vld [vmem:[%s111 + $0x28] sm:$0xff]
    %v118 = vld [vmem:[%s111 + $0x30] sm:$0xff]
    %v119 = vld [vmem:[%s111 + $0x38] sm:$0xff]
    %v120 = vld [vmem:[%s111 + $0x40] sm:$0xff]
    %v121 = vld [vmem:[%s111 + $0x48] sm:$0xff]
    %v122 = vld [vmem:[%s111 + $0x50] sm:$0xff]
    %v123 = vld [vmem:[%s111 + $0x58] sm:$0xff]
    %v124 = vld [vmem:[%s111 + $0x60] sm:$0xff]
    %v125 = vld [vmem:[%s111 + $0x68] sm:$0xff]
    %v126 = vld [vmem:[%s111 + $0x70] sm:$0xff]
    %v127 = vld [vmem:[%s111 + $0x78] sm:$0xff]
    %s128 = scalar_lea.vmem %s2, 1
    %v129 = vld [vmem:[%s128] sm:$0x1]
    %v131 = vlaneseq
    %v132 = vshrl.u32 %v131, 7
    %v133 = vsub.s32 0, %v132
    %v134 = vrot.slane %v129, %v133
    %136 = vmatprep.subr.mxu0 0.0
    %137 = vmatpush1.msra.mxu0 %v112
    %138 = vmatprep.subr.mxu0 0.0
    %139 = vmatpush1.msra.mxu0 %v113
    %140 = vmatprep.subr.mxu0 0.0
    %141 = vmatpush1.msra.mxu0 %v114
    %142 = vmatprep.subr.mxu0 0.0
    %143 = vmatpush1.msra.mxu0 %v115
    %144 = vmatprep.subr.mxu0 0.0
    %145 = vmatpush1.msra.mxu0 %v116
    %146 = vmatprep.subr.mxu0 0.0
    %147 = vmatpush1.msra.mxu0 %v117
    %148 = vmatprep.subr.mxu0 0.0
    %149 = vmatpush1.msra.mxu0 %v118
    %150 = vmatprep.subr.mxu0 0.0
    %151 = vmatpush1.msra.mxu0 %v119
    %152 = vmatprep.subr.mxu0 0.0
    %153 = vmatpush1.msra.mxu0 %v120
    %154 = vmatprep.subr.mxu0 0.0
    %155 = vmatpush1.msra.mxu0 %v121
    %156 = vmatprep.subr.mxu0 0.0
    %157 = vmatpush1.msra.mxu0 %v122
    %158 = vmatprep.subr.mxu0 0.0
    %159 = vmatpush1.msra.mxu0 %v123
    %160 = vmatprep.subr.mxu0 0.0
    %161 = vmatpush1.msra.mxu0 %v124
    %162 = vmatprep.subr.mxu0 0.0
    %163 = vmatpush1.msra.mxu0 %v125
    %164 = vmatprep.subr.mxu0 0.0
    %165 = vmatpush1.msra.mxu0 %v126
    %166 = vmatprep.subr.mxu0 0.0
    %167 = vmatpush1.msra.mxu0 %v127
    %168 = vmatprep.subr.mxu0 0.0
    %169 = vmatpush1.msra.mxu0 0.0
    %170 = vmatprep.subr.mxu0 0.0
    %171 = vmatpush1.msra.mxu0 0.0
    %172 = vmatprep.subr.mxu0 0.0
    %173 = vmatpush1.msra.mxu0 0.0
    %174 = vmatprep.subr.mxu0 0.0
    %175 = vmatpush1.msra.mxu0 0.0
    %176 = vmatprep.subr.mxu0 0.0
    %177 = vmatpush1.msra.mxu0 0.0
    %178 = vmatprep.subr.mxu0 0.0
    %179 = vmatpush1.msra.mxu0 0.0
    %180 = vmatprep.subr.mxu0 0.0
    %181 = vmatpush1.msra.mxu0 0.0
    %182 = vmatprep.subr.mxu0 0.0
    %183 = vmatpush1.msra.mxu0 0.0
    %184 = vmatprep.subr.mxu0 0.0
    %185 = vmatpush1.msra.mxu0 0.0
    %186 = vmatprep.subr.mxu0 0.0
    %187 = vmatpush1.msra.mxu0 0.0
    %188 = vmatprep.subr.mxu0 0.0
    %189 = vmatpush1.msra.mxu0 0.0
    %190 = vmatprep.subr.mxu0 0.0
    %191 = vmatpush1.msra.mxu0 0.0
    %192 = vmatprep.subr.mxu0 0.0
    %193 = vmatpush1.msra.mxu0 0.0
    %194 = vmatprep.subr.mxu0 0.0
    %195 = vmatpush1.msra.mxu0 0.0
    %196 = vmatprep.subr.mxu0 0.0
    %197 = vmatpush1.msra.mxu0 0.0
    %198 = vmatprep.subr.mxu0 0.0
    %199 = vmatpush1.msra.mxu0 0.0
    %200 = vmatprep.mubr.f32.mxu0 0.0
    %201 = vmatmul.mubr.f32.gmra.mrb[0].mxu0 %v110
    %v202 = vpop.f32.mrb[0].mxu0
    %v203 = vadd.f32 %v134, %v202
    %v204 = vpop.f32.mrb[0].mxu0
    %205 = vdwg.mxu0
    %s206 = scalar_lea.vmem [#allocation2], 8
    %207 = vst [vmem:[%s206] sm:$0xff] %v203
    %v208 = vld [vmem:[%s0] sm:$0xff]
    %s209 = scalar_lea.vmem %s1, 256
    %v210 = vld [vmem:[%s209] sm:$0xff]
    %v211 = vld [vmem:[%s209 + $0x8] sm:$0xff]
    %v212 = vld [vmem:[%s209 + $0x10] sm:$0xff]
    %v213 = vld [vmem:[%s209 + $0x18] sm:$0xff]
    %v214 = vld [vmem:[%s209 + $0x20] sm:$0xff]
    %v215 = vld [vmem:[%s209 + $0x28] sm:$0xff]
    %v216 = vld [vmem:[%s209 + $0x30] sm:$0xff]
    %v217 = vld [vmem:[%s209 + $0x38] sm:$0xff]
    %v218 = vld [vmem:[%s209 + $0x40] sm:$0xff]
    %v219 = vld [vmem:[%s209 + $0x48] sm:$0xff]
    %v220 = vld [vmem:[%s209 + $0x50] sm:$0xff]
    %v221 = vld [vmem:[%s209 + $0x58] sm:$0xff]
    %v222 = vld [vmem:[%s209 + $0x60] sm:$0xff]
    %v223 = vld [vmem:[%s209 + $0x68] sm:$0xff]
    %v224 = vld [vmem:[%s209 + $0x70] sm:$0xff]
    %v225 = vld [vmem:[%s209 + $0x78] sm:$0xff]
    %s226 = scalar_lea.vmem %s2, 2
    %v227 = vld [vmem:[%s226] sm:$0x1]
    %v229 = vlaneseq
    %v230 = vshrl.u32 %v229, 7
    %v231 = vsub.s32 0, %v230
    %v232 = vrot.slane %v227, %v231
    %234 = vmatprep.subr.mxu0 0.0
    %235 = vmatpush1.msra.mxu0 %v210
    %236 = vmatprep.subr.mxu0 0.0
    %237 = vmatpush1.msra.mxu0 %v211
    %238 = vmatprep.subr.mxu0 0.0
    %239 = vmatpush1.msra.mxu0 %v212
    %240 = vmatprep.subr.mxu0 0.0
    %241 = vmatpush1.msra.mxu0 %v213
    %242 = vmatprep.subr.mxu0 0.0
    %243 = vmatpush1.msra.mxu0 %v214
    %244 = vmatprep.subr.mxu0 0.0
    %245 = vmatpush1.msra.mxu0 %v215
    %246 = vmatprep.subr.mxu0 0.0
    %247 = vmatpush1.msra.mxu0 %v216
    %248 = vmatprep.subr.mxu0 0.0
    %249 = vmatpush1.msra.mxu0 %v217
    %250 = vmatprep.subr.mxu0 0.0
    %251 = vmatpush1.msra.mxu0 %v218
    %252 = vmatprep.subr.mxu0 0.0
    %253 = vmatpush1.msra.mxu0 %v219
    %254 = vmatprep.subr.mxu0 0.0
    %255 = vmatpush1.msra.mxu0 %v220
    %256 = vmatprep.subr.mxu0 0.0
    %257 = vmatpush1.msra.mxu0 %v221
    %258 = vmatprep.subr.mxu0 0.0
    %259 = vmatpush1.msra.mxu0 %v222
    %260 = vmatprep.subr.mxu0 0.0
    %261 = vmatpush1.msra.mxu0 %v223
    %262 = vmatprep.subr.mxu0 0.0
    %263 = vmatpush1.msra.mxu0 %v224
    %264 = vmatprep.subr.mxu0 0.0
    %265 = vmatpush1.msra.mxu0 %v225
    %266 = vmatprep.subr.mxu0 0.0
    %267 = vmatpush1.msra.mxu0 0.0
    %268 = vmatprep.subr.mxu0 0.0
    %269 = vmatpush1.msra.mxu0 0.0
    %270 = vmatprep.subr.mxu0 0.0
    %271 = vmatpush1.msra.mxu0 0.0
    %272 = vmatprep.subr.mxu0 0.0
    %273 = vmatpush1.msra.mxu0 0.0
    %274 = vmatprep.subr.mxu0 0.0
    %275 = vmatpush1.msra.mxu0 0.0
    %276 = vmatprep.subr.mxu0 0.0
    %277 = vmatpush1.msra.mxu0 0.0
    %278 = vmatprep.subr.mxu0 0.0
    %279 = vmatpush1.msra.mxu0 0.0
    %280 = vmatprep.subr.mxu0 0.0
    %281 = vmatpush1.msra.mxu0 0.0
    %282 = vmatprep.subr.mxu0 0.0
    %283 = vmatpush1.msra.mxu0 0.0
    %284 = vmatprep.subr.mxu0 0.0
    %285 = vmatpush1.msra.mxu0 0.0
    %286 = vmatprep.subr.mxu0 0.0
    %287 = vmatpush1.msra.mxu0 0.0
    %288 = vmatprep.subr.mxu0 0.0
    %289 = vmatpush1.msra.mxu0 0.0
    %290 = vmatprep.subr.mxu0 0.0
    %291 = vmatpush1.msra.mxu0 0.0
    %292 = vmatprep.subr.mxu0 0.0
    %293 = vmatpush1.msra.mxu0 0.0
    %294 = vmatprep.subr.mxu0 0.0
    %295 = vmatpush1.msra.mxu0 0.0
    %296 = vmatprep.subr.mxu0 0.0
    %297 = vmatpush1.msra.mxu0 0.0
    %298 = vmatprep.mubr.f32.mxu0 0.0
    %299 = vmatmul.mubr.f32.gmra.mrb[0].mxu0 %v208
    %v300 = vpop.f32.mrb[0].mxu0
    %v301 = vadd.f32 %v232, %v300
    %v302 = vpop.f32.mrb[0].mxu0
    %303 = vdwg.mxu0
    %s304 = scalar_lea.vmem [#allocation2], 16
    %305 = vst [vmem:[%s304] sm:$0xff] %v301
    %v306 = vld [vmem:[%s0] sm:$0xff]
    %s307 = scalar_lea.vmem %s1, 384
    %v308 = vld [vmem:[%s307] sm:$0xff]
    %v309 = vld [vmem:[%s307 + $0x8] sm:$0xff]
    %v310 = vld [vmem:[%s307 + $0x10] sm:$0xff]
    %v311 = vld [vmem:[%s307 + $0x18] sm:$0xff]
    %v312 = vld [vmem:[%s307 + $0x20] sm:$0xff]
    %v313 = vld [vmem:[%s307 + $0x28] sm:$0xff]
    %v314 = vld [vmem:[%s307 + $0x30] sm:$0xff]
    %v315 = vld [vmem:[%s307 + $0x38] sm:$0xff]
    %v316 = vld [vmem:[%s307 + $0x40] sm:$0xff]
    %v317 = vld [vmem:[%s307 + $0x48] sm:$0xff]
    %v318 = vld [vmem:[%s307 + $0x50] sm:$0xff]
    %v319 = vld [vmem:[%s307 + $0x58] sm:$0xff]
    %v320 = vld [vmem:[%s307 + $0x60] sm:$0xff]
    %v321 = vld [vmem:[%s307 + $0x68] sm:$0xff]
    %v322 = vld [vmem:[%s307 + $0x70] sm:$0xff]
    %v323 = vld [vmem:[%s307 + $0x78] sm:$0xff]
    %s324 = scalar_lea.vmem %s2, 3
    %v325 = vld [vmem:[%s324] sm:$0x1]
    %v327 = vlaneseq
    %v328 = vshrl.u32 %v327, 7
    %v329 = vsub.s32 0, %v328
    %v330 = vrot.slane %v325, %v329
    %332 = vmatprep.subr.mxu0 0.0
    %333 = vmatpush1.msra.mxu0 %v308
    %334 = vmatprep.subr.mxu0 0.0
    %335 = vmatpush1.msra.mxu0 %v309
    %336 = vmatprep.subr.mxu0 0.0
    %337 = vmatpush1.msra.mxu0 %v310
    %338 = vmatprep.subr.mxu0 0.0
    %339 = vmatpush1.msra.mxu0 %v311
    %340 = vmatprep.subr.mxu0 0.0
    %341 = vmatpush1.msra.mxu0 %v312
    %342 = vmatprep.subr.mxu0 0.0
    %343 = vmatpush1.msra.mxu0 %v313
    %344 = vmatprep.subr.mxu0 0.0
    %345 = vmatpush1.msra.mxu0 %v314
    %346 = vmatprep.subr.mxu0 0.0
    %347 = vmatpush1.msra.mxu0 %v315
    %348 = vmatprep.subr.mxu0 0.0
    %349 = vmatpush1.msra.mxu0 %v316
    %350 = vmatprep.subr.mxu0 0.0
    %351 = vmatpush1.msra.mxu0 %v317
    %352 = vmatprep.subr.mxu0 0.0
    %353 = vmatpush1.msra.mxu0 %v318
    %354 = vmatprep.subr.mxu0 0.0
    %355 = vmatpush1.msra.mxu0 %v319
    %356 = vmatprep.subr.mxu0 0.0
    %357 = vmatpush1.msra.mxu0 %v320
    %358 = vmatprep.subr.mxu0 0.0
    %359 = vmatpush1.msra.mxu0 %v321
    %360 = vmatprep.subr.mxu0 0.0
    %361 = vmatpush1.msra.mxu0 %v322
    %362 = vmatprep.subr.mxu0 0.0
    %363 = vmatpush1.msra.mxu0 %v323
    %364 = vmatprep.subr.mxu0 0.0
    %365 = vmatpush1.msra.mxu0 0.0
    %366 = vmatprep.subr.mxu0 0.0
    %367 = vmatpush1.msra.mxu0 0.0
    %368 = vmatprep.subr.mxu0 0.0
    %369 = vmatpush1.msra.mxu0 0.0
    %370 = vmatprep.subr.mxu0 0.0
    %371 = vmatpush1.msra.mxu0 0.0
    %372 = vmatprep.subr.mxu0 0.0
    %373 = vmatpush1.msra.mxu0 0.0
    %374 = vmatprep.subr.mxu0 0.0
    %375 = vmatpush1.msra.mxu0 0.0
    %376 = vmatprep.subr.mxu0 0.0
    %377 = vmatpush1.msra.mxu0 0.0
    %378 = vmatprep.subr.mxu0 0.0
    %379 = vmatpush1.msra.mxu0 0.0
    %380 = vmatprep.subr.mxu0 0.0
    %381 = vmatpush1.msra.mxu0 0.0
    %382 = vmatprep.subr.mxu0 0.0
    %383 = vmatpush1.msra.mxu0 0.0
    %384 = vmatprep.subr.mxu0 0.0
    %385 = vmatpush1.msra.mxu0 0.0
    %386 = vmatprep.subr.mxu0 0.0
    %387 = vmatpush1.msra.mxu0 0.0
    %388 = vmatprep.subr.mxu0 0.0
    %389 = vmatpush1.msra.mxu0 0.0
    %390 = vmatprep.subr.mxu0 0.0
    %391 = vmatpush1.msra.mxu0 0.0
    %392 = vmatprep.subr.mxu0 0.0
    %393 = vmatpush1.msra.mxu0 0.0
    %394 = vmatprep.subr.mxu0 0.0
    %395 = vmatpush1.msra.mxu0 0.0
    %396 = vmatprep.mubr.f32.mxu0 0.0
    %397 = vmatmul.mubr.f32.gmra.mrb[0].mxu0 %v306
    %v398 = vpop.f32.mrb[0].mxu0
    %v399 = vadd.f32 %v330, %v398
    %v400 = vpop.f32.mrb[0].mxu0
    %401 = vdwg.mxu0
    %s402 = scalar_lea.vmem [#allocation2], 24
    %403 = vst [vmem:[%s402] sm:$0xff] %v399
    %v404 = vld [vmem:[%s0] sm:$0xff]
    %s405 = scalar_lea.vmem %s1, 512
    %v406 = vld [vmem:[%s405] sm:$0xff]
    %v407 = vld [vmem:[%s405 + $0x8] sm:$0xff]
    %v408 = vld [vmem:[%s405 + $0x10] sm:$0xff]
    %v409 = vld [vmem:[%s405 + $0x18] sm:$0xff]
    %v410 = vld [vmem:[%s405 + $0x20] sm:$0xff]
    %v411 = vld [vmem:[%s405 + $0x28] sm:$0xff]
    %v412 = vld [vmem:[%s405 + $0x30] sm:$0xff]
    %v413 = vld [vmem:[%s405 + $0x38] sm:$0xff]
    %v414 = vld [vmem:[%s405 + $0x40] sm:$0xff]
    %v415 = vld [vmem:[%s405 + $0x48] sm:$0xff]
    %v416 = vld [vmem:[%s405 + $0x50] sm:$0xff]
    %v417 = vld [vmem:[%s405 + $0x58] sm:$0xff]
    %v418 = vld [vmem:[%s405 + $0x60] sm:$0xff]
    %v419 = vld [vmem:[%s405 + $0x68] sm:$0xff]
    %v420 = vld [vmem:[%s405 + $0x70] sm:$0xff]
    %v421 = vld [vmem:[%s405 + $0x78] sm:$0xff]
    %s422 = scalar_lea.vmem %s2, 4
    %v423 = vld [vmem:[%s422] sm:$0x1]
    %v425 = vlaneseq
    %v426 = vshrl.u32 %v425, 7
    %v427 = vsub.s32 0, %v426
    %v428 = vrot.slane %v423, %v427
    %430 = vmatprep.subr.mxu0 0.0
    %431 = vmatpush1.msra.mxu0 %v406
    %432 = vmatprep.subr.mxu0 0.0
    %433 = vmatpush1.msra.mxu0 %v407
    %434 = vmatprep.subr.mxu0 0.0
    %435 = vmatpush1.msra.mxu0 %v408
    %436 = vmatprep.subr.mxu0 0.0
    %437 = vmatpush1.msra.mxu0 %v409
    %438 = vmatprep.subr.mxu0 0.0
    %439 = vmatpush1.msra.mxu0 %v410
    %440 = vmatprep.subr.mxu0 0.0
    %441 = vmatpush1.msra.mxu0 %v411
    %442 = vmatprep.subr.mxu0 0.0
    %443 = vmatpush1.msra.mxu0 %v412
    %444 = vmatprep.subr.mxu0 0.0
    %445 = vmatpush1.msra.mxu0 %v413
    %446 = vmatprep.subr.mxu0 0.0
    %447 = vmatpush1.msra.mxu0 %v414
    %448 = vmatprep.subr.mxu0 0.0
    %449 = vmatpush1.msra.mxu0 %v415
    %450 = vmatprep.subr.mxu0 0.0
    %451 = vmatpush1.msra.mxu0 %v416
    %452 = vmatprep.subr.mxu0 0.0
    %453 = vmatpush1.msra.mxu0 %v417
    %454 = vmatprep.subr.mxu0 0.0
    %455 = vmatpush1.msra.mxu0 %v418
    %456 = vmatprep.subr.mxu0 0.0
    %457 = vmatpush1.msra.mxu0 %v419
    %458 = vmatprep.subr.mxu0 0.0
    %459 = vmatpush1.msra.mxu0 %v420
    %460 = vmatprep.subr.mxu0 0.0
    %461 = vmatpush1.msra.mxu0 %v421
    %462 = vmatprep.subr.mxu0 0.0
    %463 = vmatpush1.msra.mxu0 0.0
    %464 = vmatprep.subr.mxu0 0.0
    %465 = vmatpush1.msra.mxu0 0.0
    %466 = vmatprep.subr.mxu0 0.0
    %467 = vmatpush1.msra.mxu0 0.0
    %468 = vmatprep.subr.mxu0 0.0
    %469 = vmatpush1.msra.mxu0 0.0
    %470 = vmatprep.subr.mxu0 0.0
    %471 = vmatpush1.msra.mxu0 0.0
    %472 = vmatprep.subr.mxu0 0.0
    %473 = vmatpush1.msra.mxu0 0.0
    %474 = vmatprep.subr.mxu0 0.0
    %475 = vmatpush1.msra.mxu0 0.0
    %476 = vmatprep.subr.mxu0 0.0
    %477 = vmatpush1.msra.mxu0 0.0
    %478 = vmatprep.subr.mxu0 0.0
    %479 = vmatpush1.msra.mxu0 0.0
    %480 = vmatprep.subr.mxu0 0.0
    %481 = vmatpush1.msra.mxu0 0.0
    %482 = vmatprep.subr.mxu0 0.0
    %483 = vmatpush1.msra.mxu0 0.0
    %484 = vmatprep.subr.mxu0 0.0
    %485 = vmatpush1.msra.mxu0 0.0
    %486 = vmatprep.subr.mxu0 0.0
    %487 = vmatpush1.msra.mxu0 0.0
    %488 = vmatprep.subr.mxu0 0.0
    %489 = vmatpush1.msra.mxu0 0.0
    %490 = vmatprep.subr.mxu0 0.0
    %491 = vmatpush1.msra.mxu0 0.0
    %492 = vmatprep.subr.mxu0 0.0
    %493 = vmatpush1.msra.mxu0 0.0
    %494 = vmatprep.mubr.f32.mxu0 0.0
    %495 = vmatmul.mubr.f32.gmra.mrb[0].mxu0 %v404
    %v496 = vpop.f32.mrb[0].mxu0
    %v497 = vadd.f32 %v428, %v496
    %v498 = vpop.f32.mrb[0].mxu0
    %499 = vdwg.mxu0
    %s500 = scalar_lea.vmem [#allocation2], 32
    %501 = vst [vmem:[%s500] sm:$0xff] %v497
    %v502 = vld [vmem:[%s0] sm:$0xff]
    %s503 = scalar_lea.vmem %s1, 640
    %v504 = vld [vmem:[%s503] sm:$0xff]
    %v505 = vld [vmem:[%s503 + $0x8] sm:$0xff]
    %v506 = vld [vmem:[%s503 + $0x10] sm:$0xff]
    %v507 = vld [vmem:[%s503 + $0x18] sm:$0xff]
    %v508 = vld [vmem:[%s503 + $0x20] sm:$0xff]
    %v509 = vld [vmem:[%s503 + $0x28] sm:$0xff]
    %v510 = vld [vmem:[%s503 + $0x30] sm:$0xff]
    %v511 = vld [vmem:[%s503 + $0x38] sm:$0xff]
    %v512 = vld [vmem:[%s503 + $0x40] sm:$0xff]
    %v513 = vld [vmem:[%s503 + $0x48] sm:$0xff]
    %v514 = vld [vmem:[%s503 + $0x50] sm:$0xff]
    %v515 = vld [vmem:[%s503 + $0x58] sm:$0xff]
    %v516 = vld [vmem:[%s503 + $0x60] sm:$0xff]
    %v517 = vld [vmem:[%s503 + $0x68] sm:$0xff]
    %v518 = vld [vmem:[%s503 + $0x70] sm:$0xff]
    %v519 = vld [vmem:[%s503 + $0x78] sm:$0xff]
    %s520 = scalar_lea.vmem %s2, 5
    %v521 = vld [vmem:[%s520] sm:$0x1]
    %v523 = vlaneseq
    %v524 = vshrl.u32 %v523, 7
    %v525 = vsub.s32 0, %v524
    %v526 = vrot.slane %v521, %v525
    %528 = vmatprep.subr.mxu0 0.0
    %529 = vmatpush1.msra.mxu0 %v504
    %530 = vmatprep.subr.mxu0 0.0
    %531 = vmatpush1.msra.mxu0 %v505
    %532 = vmatprep.subr.mxu0 0.0
    %533 = vmatpush1.msra.mxu0 %v506
    %534 = vmatprep.subr.mxu0 0.0
    %535 = vmatpush1.msra.mxu0 %v507
    %536 = vmatprep.subr.mxu0 0.0
    %537 = vmatpush1.msra.mxu0 %v508
    %538 = vmatprep.subr.mxu0 0.0
    %539 = vmatpush1.msra.mxu0 %v509
    %540 = vmatprep.subr.mxu0 0.0
    %541 = vmatpush1.msra.mxu0 %v510
    %542 = vmatprep.subr.mxu0 0.0
    %543 = vmatpush1.msra.mxu0 %v511
    %544 = vmatprep.subr.mxu0 0.0
    %545 = vmatpush1.msra.mxu0 %v512
    %546 = vmatprep.subr.mxu0 0.0
    %547 = vmatpush1.msra.mxu0 %v513
    %548 = vmatprep.subr.mxu0 0.0
    %549 = vmatpush1.msra.mxu0 %v514
    %550 = vmatprep.subr.mxu0 0.0
    %551 = vmatpush1.msra.mxu0 %v515
    %552 = vmatprep.subr.mxu0 0.0
    %553 = vmatpush1.msra.mxu0 %v516
    %554 = vmatprep.subr.mxu0 0.0
    %555 = vmatpush1.msra.mxu0 %v517
    %556 = vmatprep.subr.mxu0 0.0
    %557 = vmatpush1.msra.mxu0 %v518
    %558 = vmatprep.subr.mxu0 0.0
    %559 = vmatpush1.msra.mxu0 %v519
    %560 = vmatprep.subr.mxu0 0.0
    %561 = vmatpush1.msra.mxu0 0.0
    %562 = vmatprep.subr.mxu0 0.0
    %563 = vmatpush1.msra.mxu0 0.0
    %564 = vmatprep.subr.mxu0 0.0
    %565 = vmatpush1.msra.mxu0 0.0
    %566 = vmatprep.subr.mxu0 0.0
    %567 = vmatpush1.msra.mxu0 0.0
    %568 = vmatprep.subr.mxu0 0.0
    %569 = vmatpush1.msra.mxu0 0.0
    %570 = vmatprep.subr.mxu0 0.0
    %571 = vmatpush1.msra.mxu0 0.0
    %572 = vmatprep.subr.mxu0 0.0
    %573 = vmatpush1.msra.mxu0 0.0
    %574 = vmatprep.subr.mxu0 0.0
    %575 = vmatpush1.msra.mxu0 0.0
    %576 = vmatprep.subr.mxu0 0.0
    %577 = vmatpush1.msra.mxu0 0.0
    %578 = vmatprep.subr.mxu0 0.0
    %579 = vmatpush1.msra.mxu0 0.0
    %580 = vmatprep.subr.mxu0 0.0
    %581 = vmatpush1.msra.mxu0 0.0
    %582 = vmatprep.subr.mxu0 0.0
    %583 = vmatpush1.msra.mxu0 0.0
    %584 = vmatprep.subr.mxu0 0.0
    %585 = vmatpush1.msra.mxu0 0.0
    %586 = vmatprep.subr.mxu0 0.0
    %587 = vmatpush1.msra.mxu0 0.0
    %588 = vmatprep.subr.mxu0 0.0
    %589 = vmatpush1.msra.mxu0 0.0
    %590 = vmatprep.subr.mxu0 0.0
    %591 = vmatpush1.msra.mxu0 0.0
    %592 = vmatprep.mubr.f32.mxu0 0.0
    %593 = vmatmul.mubr.f32.gmra.mrb[0].mxu0 %v502
    %v594 = vpop.f32.mrb[0].mxu0
    %v595 = vadd.f32 %v526, %v594
    %v596 = vpop.f32.mrb[0].mxu0
    %597 = vdwg.mxu0
    %s598 = scalar_lea.vmem [#allocation2], 40
    %599 = vst [vmem:[%s598] sm:$0xff] %v595
    %v600 = vld [vmem:[%s0] sm:$0xff]
    %s601 = scalar_lea.vmem %s1, 768
    %v602 = vld [vmem:[%s601] sm:$0xff]
    %v603 = vld [vmem:[%s601 + $0x8] sm:$0xff]
    %v604 = vld [vmem:[%s601 + $0x10] sm:$0xff]
    %v605 = vld [vmem:[%s601 + $0x18] sm:$0xff]
    %v606 = vld [vmem:[%s601 + $0x20] sm:$0xff]
    %v607 = vld [vmem:[%s601 + $0x28] sm:$0xff]
    %v608 = vld [vmem:[%s601 + $0x30] sm:$0xff]
    %v609 = vld [vmem:[%s601 + $0x38] sm:$0xff]
    %v610 = vld [vmem:[%s601 + $0x40] sm:$0xff]
    %v611 = vld [vmem:[%s601 + $0x48] sm:$0xff]
    %v612 = vld [vmem:[%s601 + $0x50] sm:$0xff]
    %v613 = vld [vmem:[%s601 + $0x58] sm:$0xff]
    %v614 = vld [vmem:[%s601 + $0x60] sm:$0xff]
    %v615 = vld [vmem:[%s601 + $0x68] sm:$0xff]
    %v616 = vld [vmem:[%s601 + $0x70] sm:$0xff]
    %v617 = vld [vmem:[%s601 + $0x78] sm:$0xff]
    %s618 = scalar_lea.vmem %s2, 6
    %v619 = vld [vmem:[%s618] sm:$0x1]
    %v621 = vlaneseq
    %v622 = vshrl.u32 %v621, 7
    %v623 = vsub.s32 0, %v622
    %v624 = vrot.slane %v619, %v623
    %626 = vmatprep.subr.mxu0 0.0
    %627 = vmatpush1.msra.mxu0 %v602
    %628 = vmatprep.subr.mxu0 0.0
    %629 = vmatpush1.msra.mxu0 %v603
    %630 = vmatprep.subr.mxu0 0.0
    %631 = vmatpush1.msra.mxu0 %v604
    %632 = vmatprep.subr.mxu0 0.0
    %633 = vmatpush1.msra.mxu0 %v605
    %634 = vmatprep.subr.mxu0 0.0
    %635 = vmatpush1.msra.mxu0 %v606
    %636 = vmatprep.subr.mxu0 0.0
    %637 = vmatpush1.msra.mxu0 %v607
    %638 = vmatprep.subr.mxu0 0.0
    %639 = vmatpush1.msra.mxu0 %v608
    %640 = vmatprep.subr.mxu0 0.0
    %641 = vmatpush1.msra.mxu0 %v609
    %642 = vmatprep.subr.mxu0 0.0
    %643 = vmatpush1.msra.mxu0 %v610
    %644 = vmatprep.subr.mxu0 0.0
    %645 = vmatpush1.msra.mxu0 %v611
    %646 = vmatprep.subr.mxu0 0.0
    %647 = vmatpush1.msra.mxu0 %v612
    %648 = vmatprep.subr.mxu0 0.0
    %649 = vmatpush1.msra.mxu0 %v613
    %650 = vmatprep.subr.mxu0 0.0
    %651 = vmatpush1.msra.mxu0 %v614
    %652 = vmatprep.subr.mxu0 0.0
    %653 = vmatpush1.msra.mxu0 %v615
    %654 = vmatprep.subr.mxu0 0.0
    %655 = vmatpush1.msra.mxu0 %v616
    %656 = vmatprep.subr.mxu0 0.0
    %657 = vmatpush1.msra.mxu0 %v617
    %658 = vmatprep.subr.mxu0 0.0
    %659 = vmatpush1.msra.mxu0 0.0
    %660 = vmatprep.subr.mxu0 0.0
    %661 = vmatpush1.msra.mxu0 0.0
    %662 = vmatprep.subr.mxu0 0.0
    %663 = vmatpush1.msra.mxu0 0.0
    %664 = vmatprep.subr.mxu0 0.0
    %665 = vmatpush1.msra.mxu0 0.0
    %666 = vmatprep.subr.mxu0 0.0
    %667 = vmatpush1.msra.mxu0 0.0
    %668 = vmatprep.subr.mxu0 0.0
    %669 = vmatpush1.msra.mxu0 0.0
    %670 = vmatprep.subr.mxu0 0.0
    %671 = vmatpush1.msra.mxu0 0.0
    %672 = vmatprep.subr.mxu0 0.0
    %673 = vmatpush1.msra.mxu0 0.0
    %674 = vmatprep.subr.mxu0 0.0
    %675 = vmatpush1.msra.mxu0 0.0
    %676 = vmatprep.subr.mxu0 0.0
    %677 = vmatpush1.msra.mxu0 0.0
    %678 = vmatprep.subr.mxu0 0.0
    %679 = vmatpush1.msra.mxu0 0.0
    %680 = vmatprep.subr.mxu0 0.0
    %681 = vmatpush1.msra.mxu0 0.0
    %682 = vmatprep.subr.mxu0 0.0
    %683 = vmatpush1.msra.mxu0 0.0
    %684 = vmatprep.subr.mxu0 0.0
    %685 = vmatpush1.msra.mxu0 0.0
    %686 = vmatprep.subr.mxu0 0.0
    %687 = vmatpush1.msra.mxu0 0.0
    %688 = vmatprep.subr.mxu0 0.0
    %689 = vmatpush1.msra.mxu0 0.0
    %690 = vmatprep.mubr.f32.mxu0 0.0
    %691 = vmatmul.mubr.f32.gmra.mrb[0].mxu0 %v600
    %v692 = vpop.f32.mrb[0].mxu0
    %v693 = vadd.f32 %v624, %v692
    %v694 = vpop.f32.mrb[0].mxu0
    %695 = vdwg.mxu0
    %s696 = scalar_lea.vmem [#allocation2], 48
    %697 = vst [vmem:[%s696] sm:$0xff] %v693
    // Predicated region
    $region14: #{ensemble_linear.1} parent=1 // pred_check
      _
    $region15: #{ensemble_linear.1} parent=1 // pred_check_branch
      %699 = sbr.rel (0) target = $region17
    $region16: #{ensemble_linear.1} parent=1 // pred_region
      %s701 = ssub.s32 896, 896
      %702 = vsyncadd [#allocation3], %s701
      %s703 = sshll.u32 [#allocation2], 4
      %s704 = int_to_ptr.vmem [resolvable:$true] %s703
      %709 = dma.vmem_to_hbm [thread:$0]  %s704, 896, %s3, [#allocation3], 128, 128, 8
    $region17: #{ensemble_linear.1} parent=1 // pred_fallthru
      _
    // Predicated region
    $region18: #{ensemble_linear.1} parent=1 // pred_check
      _
    $region19: #{ensemble_linear.1} parent=1 // pred_check_branch
      %711 = sbr.rel (0) target = $region21
    $region20: #{ensemble_linear.1} parent=1 // pred_region
      %712 = dma.done [#allocation3], 896
    $region21: #{ensemble_linear.1} parent=1 // pred_fallthru
      _
    %713 = vsyncpa [#allocation3], 1

</llo_original>
